<compile_context>
chip_gen: v7x
topology: tpu7x:2x2x1
jax: 0.10.0
libtpu: 0.0.40
codegen_flags: <defaults>
</compile_context>

<pallas_src>
import functools

import jax
import jax.numpy as jnp
from jax.experimental import pallas as pl
from jax.experimental.pallas import tpu as pltpu


def _embed_onehot_kernel(ids_ref, w_ref, out_ref):
    """Gather via one-hot matmul on the MXU (best for small/medium vocab)."""
    # ids_ref: (T, 1) int32  token ids of this chunk (sublane-major -> cheap lane broadcast).
    # w_ref:   (V, D)        full embedding table, VMEM-resident (constant block index).
    # out_ref: (T, D)        gathered embedding rows.
    ids = ids_ref[...]                                        # (T, 1)
    T = out_ref.shape[0]
    V = w_ref.shape[0]
    vocab_iota = jax.lax.broadcasted_iota(jnp.int32, (T, V), 1)
    onehot = (ids == vocab_iota).astype(w_ref.dtype)          # (T, V), exact 0/1
    # HIGHEST precision keeps the f32 one-hot matmul an exact row gather.
    out_ref[...] = jnp.dot(
        onehot,
        w_ref[...],
        precision=jax.lax.Precision.HIGHEST,
        preferred_element_type=jnp.float32,
    ).astype(out_ref.dtype)


def _embed_take_kernel(ids_ref, w_ref, out_ref):
    """Gather via jnp.take on the VMEM-resident table (larger vocab)."""
    ids = ids_ref[:, 0]                                       # (T,)
    out_ref[...] = jnp.take(w_ref[...], ids, axis=0).astype(out_ref.dtype)


def _round_up(n, m):
    return ((n + m - 1) // m) * m


@functools.partial(jax.jit, static_argnames=("chunk_tokens", "onehot_max_vocab"))
def word_embedding_forward(x, weights, *, chunk_tokens=256, onehot_max_vocab=512):
    """out[b, s, :] = weights[x[b, s], :]  (== torch nn.Embedding forward)."""
    B, S = x.shape
    V, D = weights.shape
    n_tokens = B * S

    # Chunk size: multiple of 8 sublanes (f32), no bigger than the padded token count.
    T = min(chunk_tokens, _round_up(n_tokens, 8))
    n_padded = _round_up(n_tokens, T)
    n_chunks = n_padded // T

    flat_idx = x.reshape(n_tokens).astype(jnp.int32)
    flat_idx = jnp.clip(flat_idx, 0, V - 1)                   # guard OOB gathers
    flat_idx = jnp.pad(flat_idx, (0, n_padded - n_tokens))    # pad rows sliced off below
    ids_2d = flat_idx.reshape(n_padded, 1)                    # sublane-major id layout

    # VMEM budget: resident table + double-buffered ids/out tiles (raise limit only if needed).
    itemsize = jnp.dtype(weights.dtype).itemsize
    table_bytes = V * D * itemsize
    out_tile_bytes = T * D * itemsize
    ids_tile_bytes = T * 128 * 4                              # (T, 1) int32 pads to 128 lanes
    vmem_needed = table_bytes + 2 * (out_tile_bytes + ids_tile_bytes) + (2 << 20)
    cp_kwargs = dict(dimension_semantics=("parallel",))       # independent chunks -> 2 TCs on v7x
    if vmem_needed > 32 * 1024 * 1024:
        cp_kwargs["vmem_limit_bytes"] = int(min(vmem_needed, 100 * 1024 * 1024))
    # TODO(synk): for tables too large to stay VMEM-resident (>~48 MiB, esp. v7x's 64 MiB
    # VMEM), fall back to weights in memory_space=pl.ANY + batched manual make_async_copy
    # row gather into a (T, D) VMEM scratch with several DMAs in flight.

    kernel = _embed_onehot_kernel if V <= onehot_max_vocab else _embed_take_kernel

    out_flat = pl.pallas_call(
        kernel,
        grid=(n_chunks,),
        in_specs=[
            # Per-chunk token ids: advances with the grid.
            pl.BlockSpec((T, 1), lambda i: (i, 0)),
            # Full embedding table, constant block index -> fetched once, reused every step.
            pl.BlockSpec((V, D), lambda i: (0, 0)),
        ],
        out_specs=pl.BlockSpec((T, D), lambda i: (i, 0)),
        out_shape=jax.ShapeDtypeStruct((n_padded, D), weights.dtype),
        compiler_params=pltpu.CompilerParams(**cp_kwargs),
    )(ids_2d, weights)

    return out_flat[:n_tokens].reshape(B, S, D)


def build_params(key, id_dict, unknown_vocab, dim):
    """Deterministic stand-in for WordEmbeddingModel.__init__ weight construction."""
    n_known = len(id_dict)
    n_unknown = len(unknown_vocab)
    k1, k2 = jax.random.split(key)
    # make_random_model: np.random.rand(len(id_dict), dim) - 0.5
    w_known = jax.random.uniform(k1, (n_known, dim), jnp.float32) - 0.5
    # __init__: np.random.rand(len(unknown_vocab), dim) / 2 - 0.25
    w_unknown = jax.random.uniform(k2, (n_unknown, dim), jnp.float32) / 2.0 - 0.25
    return jnp.concatenate([w_known, w_unknown], axis=0)


if __name__ == "__main__":
    key = jax.random.PRNGKey(0)
    k_w, k_x = jax.random.split(key)

    # Small synthetic vocab (id_dict maps words -> contiguous ids starting at 0).
    id_dict = {f"word{i}": i for i in range(20)}
    unknown_vocab = [f"unk{i}" for i in range(4)]
    vocab_size = len(id_dict) + len(unknown_vocab)   # 24
    dim = 128

    weights = build_params(k_w, id_dict, unknown_vocab, dim)   # (24, 128)

    batch, seq = 2, 8
    x = jax.random.randint(k_x, (batch, seq), 0, vocab_size, dtype=jnp.int32)

    out = word_embedding_forward(x, weights)
    out = jax.block_until_ready(out)

    # Cross-check against the plain-JAX reference (same semantics as torch gather).
    ref = jnp.take(weights, x.reshape(-1), axis=0).reshape(batch, seq, dim)
    assert out.shape == (batch, seq, dim)
    assert jnp.allclose(out, ref, rtol=1e-6, atol=1e-6), "Pallas embedding gather mismatch"

    print("KERNEL_OK")
</pallas_src>

<mosaic_0001>
module attributes {stable_mosaic.version = 11 : i64} {
  func.func @_embed_onehot_kernel(%arg0: i32, %arg1: memref<16x1xi32, #tpu.memory_space<vmem>>, %arg2: memref<24x128xf32, #tpu.memory_space<vmem>>, %arg3: memref<16x128xf32, #tpu.memory_space<vmem>>) attributes {dimension_semantics = [#tpu.dimension_semantics<parallel>], iteration_bounds = array<i64: 1>, scalar_prefetch = 0 : i64, scratch_operands = 0 : i64, tpu.core_type = #tpu.core_type<tc>, window_params = [{transform_indices = @transform_0, window_bounds = array<i64: 16, 1>}, {pipeline_mode = #tpu.pipeline_mode<synchronous>, transform_indices = @transform_1, window_bounds = array<i64: 24, 128>}, {transform_indices = @transform_2, window_bounds = array<i64: 16, 128>}]} {
    %c0 = arith.constant 0 : index
    %c0_0 = arith.constant 0 : index
    %0 = vector.load %arg1[%c0, %c0_0] : memref<16x1xi32, #tpu.memory_space<vmem>>, vector<16x1xi32>
    %1 = tpu.iota {dimensions = array<i32: 1>} : vector<16x24xi32>
    %2 = vector.broadcast %0 : vector<16x1xi32> to vector<16x24xi32>
    %3 = arith.cmpi eq, %2, %1 : vector<16x24xi32>
    %4 = arith.extui %3 : vector<16x24xi1> to vector<16x24xi32>
    %5 = arith.sitofp %4 : vector<16x24xi32> to vector<16x24xf32>
    %c0_1 = arith.constant 0 : index
    %c0_2 = arith.constant 0 : index
    %6 = vector.load %arg2[%c0_1, %c0_2] : memref<24x128xf32, #tpu.memory_space<vmem>>, vector<24x128xf32>
    %cst = arith.constant dense<0.000000e+00> : vector<16x128xf32>
    %7 = tpu.matmul %5, %6, %cst {dimension_numbers = #tpu.dot_dimension_numbers<[1], [0], [0], [1], [0, 0, 1, 1], [], []>, precision = #tpu.contract_precision<fp32>} : vector<16x24xf32>, vector<24x128xf32>, vector<16x128xf32> -> vector<16x128xf32>
    %c0_3 = arith.constant 0 : index
    %c0_4 = arith.constant 0 : index
    %8 = vector.load %arg3[%c0_3, %c0_4] : memref<16x128xf32, #tpu.memory_space<vmem>>, vector<16x128xf32>
    tpu.vector_store %arg3[%c0_3, %c0_4], %7 {strides = array<i32>} : memref<16x128xf32, #tpu.memory_space<vmem>>, vector<16x128xf32>,
    return
  }
  func.func @transform_0(%arg0: i32) -> (i32, i32) {
    %c0_i32 = arith.constant 0 : i32
    %c0_i32_0 = arith.constant 0 : i32
    return %arg0, %c0_i32 : i32, i32
  }
  func.func @transform_1(%arg0: i32) -> (i32, i32) {
    %c0_i32 = arith.constant 0 : i32
    %c0_i32_0 = arith.constant 0 : i32
    %c0_i32_1 = arith.constant 0 : i32
    return %c0_i32, %c0_i32_0 : i32, i32
  }
  func.func @transform_2(%arg0: i32) -> (i32, i32) {
    %c0_i32 = arith.constant 0 : i32
    %c0_i32_0 = arith.constant 0 : i32
    return %arg0, %c0_i32 : i32, i32
  }
}

</mosaic_0001>

<llo_original>
// kernel: word_embedding_forward.1
$region0: #{word_embedding_forward.1}
  #allocation0 [shape = 'u32[]', space=smem, size = 0x4, offset = 0x4, fixed_abs, tag = 'smem constant byte address 0x4 - core index']
  #allocation1 [shape = 'u32[144,128]{1,0:T(1,128)}', space=vmem, size = 0x12000, scoped, tag = 'internal scratch']
  %s0 = inlined_call_operand.vmem [shape: s32[16,1], index: 0, kind: input, shape index: {}]
  %s1 = inlined_call_operand.vmem [shape: f32[24,128], index: 1, kind: input, shape index: {}]
  %s2 = inlined_call_operand.hbm [shape: f32[16,128], index: 2, kind: output, shape index: {}]
  %s3 = sld [smem:[#allocation0]]
  $region18: #{word_embedding_forward.1} parent=0
    _
  %s5 = ssub.s32 1, %s3
  %s6 = scalar_select 0, %s5, %s3
  $region1: #{word_embedding_forward.1} parent=0
    #allocation2 [shape = 'u8[8192]{0}', space=vmem, size = 0x2000, scoped, tag = 'output window, operand 0, single buffered']
    #allocation3 [shape = 's32[1]{0}', space=sflag, size = 0x4, scoped, tag = 'scoped memory for word_embedding_forward.1']
    %7 = vsyncpa [#allocation3], 0
    // Predicated region
    $region2: #{word_embedding_forward.1} parent=1 // pred_check
      _
    $region3: #{word_embedding_forward.1} parent=1 // pred_check_branch
      %9 = sbr.rel (0) target = $region5
    $region4: #{word_embedding_forward.1} parent=1 // pred_region
      _
    $region5: #{word_embedding_forward.1} parent=1 // pred_fallthru
      _
    // Predicated region
    $region6: #{word_embedding_forward.1} parent=1 // pred_check
      _
    $region7: #{word_embedding_forward.1} parent=1 // pred_check_branch
      %11 = sbr.rel (0) target = $region9
    $region8: #{word_embedding_forward.1} parent=1 // pred_region
      _
    $region9: #{word_embedding_forward.1} parent=1 // pred_fallthru
      _
    %v12 = vld [vmem:[%s0] sm:$0xff]
    %v13 = vld [vmem:[%s0 + $0x8] sm:$0xff]
    %v14 = vlaneseq
    %v15 = vand.u32 %v14, 127
    %16 = vset.pattern.permute.xlu0 0
    %17 = vperm.xlu0 %16, %v12
    %v18 = vpop.permute.xlu0 %17
    %19 = vset.pattern.permute.xlu0 0
    %20 = vperm.xlu0 %19, %v13
    %v21 = vpop.permute.xlu0 %20
    %vm22 = vcmp.eq.s32.totalorder %v18, %v15
    %vm23 = vcmp.eq.s32.totalorder %v21, %v15
    %v24 = vsel %vm22, 1, 0
    %v25 = vsel %vm23, 1, 0
    %v26 = vcvt.s32.f32 %v24
    %v27 = vcvt.s32.f32 %v25
    %v28 = vld [vmem:[%s1] sm:$0xff]
    %v29 = vld [vmem:[%s1 + $0x8] sm:$0xff]
    %v30 = vld [vmem:[%s1 + $0x10] sm:$0xff]
    %vm31 = vcmask 195584
    %v33 = vsel %vm31, %v26, 0
    %v36 = vsel %vm31, %v27, 0
    %38 = vmatprep.subr.mxu0 0.0
    %v39 = vand.u32 %v28, 4294901760
    %40 = vmatpush1.msra.mxu0 %v39
    %41 = vmatprep.subr.mxu0 0.0
    %v42 = vand.u32 %v29, 4294901760
    %43 = vmatpush1.msra.mxu0 %v42
    %44 = vmatprep.subr.mxu0 0.0
    %v45 = vand.u32 %v30, 4294901760
    %46 = vmatpush1.msra.mxu0 %v45
    %47 = vmatprep.subr.mxu0 0.0
    %48 = vmatpush1.msra.mxu0 0.0
    %49 = vmatprep.subr.mxu0 0.0
    %50 = vmatpush1.msra.mxu0 0.0
    %51 = vmatprep.subr.mxu0 0.0
    %52 = vmatpush1.msra.mxu0 0.0
    %53 = vmatprep.subr.mxu0 0.0
    %54 = vmatpush1.msra.mxu0 0.0
    %55 = vmatprep.subr.mxu0 0.0
    %56 = vmatpush1.msra.mxu0 0.0
    %57 = vmatprep.subr.mxu0 0.0
    %58 = vmatpush1.msra.mxu0 0.0
    %59 = vmatprep.subr.mxu0 0.0
    %60 = vmatpush1.msra.mxu0 0.0
    %61 = vmatprep.subr.mxu0 0.0
    %62 = vmatpush1.msra.mxu0 0.0
    %63 = vmatprep.subr.mxu0 0.0
    %64 = vmatpush1.msra.mxu0 0.0
    %65 = vmatprep.subr.mxu0 0.0
    %66 = vmatpush1.msra.mxu0 0.0
    %67 = vmatprep.subr.mxu0 0.0
    %68 = vmatpush1.msra.mxu0 0.0
    %69 = vmatprep.subr.mxu0 0.0
    %70 = vmatpush1.msra.mxu0 0.0
    %71 = vmatprep.subr.mxu0 0.0
    %72 = vmatpush1.msra.mxu0 0.0
    %73 = vmatprep.subr.mxu0 0.0
    %74 = vmatpush1.msra.mxu0 0.0
    %75 = vmatprep.subr.mxu0 0.0
    %76 = vmatpush1.msra.mxu0 0.0
    %77 = vmatprep.subr.mxu0 0.0
    %78 = vmatpush1.msra.mxu0 0.0
    %79 = vmatprep.subr.mxu0 0.0
    %80 = vmatpush1.msra.mxu0 0.0
    %81 = vmatprep.subr.mxu0 0.0
    %82 = vmatpush1.msra.mxu0 0.0
    %83 = vmatprep.subr.mxu0 0.0
    %84 = vmatpush1.msra.mxu0 0.0
    %85 = vmatprep.subr.mxu0 0.0
    %86 = vmatpush1.msra.mxu0 0.0
    %87 = vmatprep.subr.mxu0 0.0
    %88 = vmatpush1.msra.mxu0 0.0
    %89 = vmatprep.subr.mxu0 0.0
    %90 = vmatpush1.msra.mxu0 0.0
    %91 = vmatprep.subr.mxu0 0.0
    %92 = vmatpush1.msra.mxu0 0.0
    %93 = vmatprep.subr.mxu0 0.0
    %94 = vmatpush1.msra.mxu0 0.0
    %95 = vmatprep.subr.mxu0 0.0
    %96 = vmatpush1.msra.mxu0 0.0
    %97 = vmatprep.subr.mxu0 0.0
    %98 = vmatpush1.msra.mxu0 0.0
    %99 = vmatprep.subr.mxu0 0.0
    %100 = vmatpush1.msra.mxu0 0.0
    %101 = vmatprep.subr.mxu0 0.0
    %102 = vmatpush1.msra.mxu0 0.0
    %103 = vmatprep.subr.mxu0 0.0
    %104 = vmatpush1.msra.mxu0 0.0
    %105 = vmatprep.mubr.f32.mxu0 0.0
    %v106 = vand.u32 %v33, 4294901760
    %v107 = vsub.f32 %v33, %v106
    %v108 = vand.u32 %v107, 4294901760
    %v109 = vsub.f32 %v107, %v108
    %v110 = vand.u32 %v109, 4294901760
    %111 = vmatmul.mubr.f32.gmra.mrb[0].mxu0 %v110
    %v112 = vpop.f32.mrb[0].mxu0
    %v113 = vadd.f32 0.0, %v112
    %v114 = vpop.f32.mrb[0].mxu0
    %115 = vmatprep.mubr.f32.mxu0 0.0
    %v116 = vand.u32 %v36, 4294901760
    %v117 = vsub.f32 %v36, %v116
    %v118 = vand.u32 %v117, 4294901760
    %v119 = vsub.f32 %v117, %v118
    %v120 = vand.u32 %v119, 4294901760
    %121 = vmatmul.mubr.f32.gmra.mrb[0].mxu0 %v120
    %v122 = vpop.f32.mrb[0].mxu0
    %v123 = vadd.f32 0.0, %v122
    %v124 = vpop.f32.mrb[0].mxu0
    %125 = vdwg.mxu0
    %126 = vmatprep.subr.mxu0 0.0
    %v127 = vand.u32 %v28, 4294901760
    %v128 = vsub.f32 %v28, %v127
    %v129 = vand.u32 %v128, 4294901760
    %v130 = vsub.f32 %v128, %v129
    %v131 = vand.u32 %v130, 4294901760
    %132 = vmatpush1.msra.mxu0 %v131
    %133 = vmatprep.subr.mxu0 0.0
    %v134 = vand.u32 %v29, 4294901760
    %v135 = vsub.f32 %v29, %v134
    %v136 = vand.u32 %v135, 4294901760
    %v137 = vsub.f32 %v135, %v136
    %v138 = vand.u32 %v137, 4294901760
    %139 = vmatpush1.msra.mxu0 %v138
    %140 = vmatprep.subr.mxu0 0.0
    %v141 = vand.u32 %v30, 4294901760
    %v142 = vsub.f32 %v30, %v141
    %v143 = vand.u32 %v142, 4294901760
    %v144 = vsub.f32 %v142, %v143
    %v145 = vand.u32 %v144, 4294901760
    %146 = vmatpush1.msra.mxu0 %v145
    %147 = vmatprep.subr.mxu0 0.0
    %148 = vmatpush1.msra.mxu0 0.0
    %149 = vmatprep.subr.mxu0 0.0
    %150 = vmatpush1.msra.mxu0 0.0
    %151 = vmatprep.subr.mxu0 0.0
    %152 = vmatpush1.msra.mxu0 0.0
    %153 = vmatprep.subr.mxu0 0.0
    %154 = vmatpush1.msra.mxu0 0.0
    %155 = vmatprep.subr.mxu0 0.0
    %156 = vmatpush1.msra.mxu0 0.0
    %157 = vmatprep.subr.mxu0 0.0
    %158 = vmatpush1.msra.mxu0 0.0
    %159 = vmatprep.subr.mxu0 0.0
    %160 = vmatpush1.msra.mxu0 0.0
    %161 = vmatprep.subr.mxu0 0.0
    %162 = vmatpush1.msra.mxu0 0.0
    %163 = vmatprep.subr.mxu0 0.0
    %164 = vmatpush1.msra.mxu0 0.0
    %165 = vmatprep.subr.mxu0 0.0
    %166 = vmatpush1.msra.mxu0 0.0
    %167 = vmatprep.subr.mxu0 0.0
    %168 = vmatpush1.msra.mxu0 0.0
    %169 = vmatprep.subr.mxu0 0.0
    %170 = vmatpush1.msra.mxu0 0.0
    %171 = vmatprep.subr.mxu0 0.0
    %172 = vmatpush1.msra.mxu0 0.0
    %173 = vmatprep.subr.mxu0 0.0
    %174 = vmatpush1.msra.mxu0 0.0
    %175 = vmatprep.subr.mxu0 0.0
    %176 = vmatpush1.msra.mxu0 0.0
    %177 = vmatprep.subr.mxu0 0.0
    %178 = vmatpush1.msra.mxu0 0.0
    %179 = vmatprep.subr.mxu0 0.0
    %180 = vmatpush1.msra.mxu0 0.0
    %181 = vmatprep.subr.mxu0 0.0
    %182 = vmatpush1.msra.mxu0 0.0
    %183 = vmatprep.subr.mxu0 0.0
    %184 = vmatpush1.msra.mxu0 0.0
    %185 = vmatprep.subr.mxu0 0.0
    %186 = vmatpush1.msra.mxu0 0.0
    %187 = vmatprep.subr.mxu0 0.0
    %188 = vmatpush1.msra.mxu0 0.0
    %189 = vmatprep.subr.mxu0 0.0
    %190 = vmatpush1.msra.mxu0 0.0
    %191 = vmatprep.subr.mxu0 0.0
    %192 = vmatpush1.msra.mxu0 0.0
    %193 = vmatprep.subr.mxu0 0.0
    %194 = vmatpush1.msra.mxu0 0.0
    %195 = vmatprep.subr.mxu0 0.0
    %196 = vmatpush1.msra.mxu0 0.0
    %197 = vmatprep.subr.mxu0 0.0
    %198 = vmatpush1.msra.mxu0 0.0
    %199 = vmatprep.subr.mxu0 0.0
    %200 = vmatpush1.msra.mxu0 0.0
    %201 = vmatprep.subr.mxu0 0.0
    %202 = vmatpush1.msra.mxu0 0.0
    %203 = vmatprep.subr.mxu0 0.0
    %204 = vmatpush1.msra.mxu0 0.0
    %205 = vmatprep.mubr.f32.mxu0 0.0
    %v206 = vand.u32 %v33, 4294901760
    %207 = vmatmul.mubr.f32.gmra.mrb[0].mxu0 %v206
    %v208 = vpop.f32.mrb[0].mxu0
    %v209 = vadd.f32 %v113, %v208
    %v210 = vpop.f32.mrb[0].mxu0
    %211 = vmatprep.mubr.f32.mxu0 0.0
    %v212 = vand.u32 %v36, 4294901760
    %213 = vmatmul.mubr.f32.gmra.mrb[0].mxu0 %v212
    %v214 = vpop.f32.mrb[0].mxu0
    %v215 = vadd.f32 %v123, %v214
    %v216 = vpop.f32.mrb[0].mxu0
    %217 = vdwg.mxu0
    %218 = vmatprep.subr.mxu0 0.0
    %v219 = vand.u32 %v28, 4294901760
    %v220 = vsub.f32 %v28, %v219
    %221 = vmatpush1.msra.mxu0 %v220
    %222 = vmatprep.subr.mxu0 0.0
    %v223 = vand.u32 %v29, 4294901760
    %v224 = vsub.f32 %v29, %v223
    %225 = vmatpush1.msra.mxu0 %v224
    %226 = vmatprep.subr.mxu0 0.0
    %v227 = vand.u32 %v30, 4294901760
    %v228 = vsub.f32 %v30, %v227
    %229 = vmatpush1.msra.mxu0 %v228
    %230 = vmatprep.subr.mxu0 0.0
    %231 = vmatpush1.msra.mxu0 0.0
    %232 = vmatprep.subr.mxu0 0.0
    %233 = vmatpush1.msra.mxu0 0.0
    %234 = vmatprep.subr.mxu0 0.0
    %235 = vmatpush1.msra.mxu0 0.0
    %236 = vmatprep.subr.mxu0 0.0
    %237 = vmatpush1.msra.mxu0 0.0
    %238 = vmatprep.subr.mxu0 0.0
    %239 = vmatpush1.msra.mxu0 0.0
    %240 = vmatprep.subr.mxu0 0.0
    %241 = vmatpush1.msra.mxu0 0.0
    %242 = vmatprep.subr.mxu0 0.0
    %243 = vmatpush1.msra.mxu0 0.0
    %244 = vmatprep.subr.mxu0 0.0
    %245 = vmatpush1.msra.mxu0 0.0
    %246 = vmatprep.subr.mxu0 0.0
    %247 = vmatpush1.msra.mxu0 0.0
    %248 = vmatprep.subr.mxu0 0.0
    %249 = vmatpush1.msra.mxu0 0.0
    %250 = vmatprep.subr.mxu0 0.0
    %251 = vmatpush1.msra.mxu0 0.0
    %252 = vmatprep.subr.mxu0 0.0
    %253 = vmatpush1.msra.mxu0 0.0
    %254 = vmatprep.subr.mxu0 0.0
    %255 = vmatpush1.msra.mxu0 0.0
    %256 = vmatprep.subr.mxu0 0.0
    %257 = vmatpush1.msra.mxu0 0.0
    %258 = vmatprep.subr.mxu0 0.0
    %259 = vmatpush1.msra.mxu0 0.0
    %260 = vmatprep.subr.mxu0 0.0
    %261 = vmatpush1.msra.mxu0 0.0
    %262 = vmatprep.subr.mxu0 0.0
    %263 = vmatpush1.msra.mxu0 0.0
    %264 = vmatprep.subr.mxu0 0.0
    %265 = vmatpush1.msra.mxu0 0.0
    %266 = vmatprep.subr.mxu0 0.0
    %267 = vmatpush1.msra.mxu0 0.0
    %268 = vmatprep.subr.mxu0 0.0
    %269 = vmatpush1.msra.mxu0 0.0
    %270 = vmatprep.subr.mxu0 0.0
    %271 = vmatpush1.msra.mxu0 0.0
    %272 = vmatprep.subr.mxu0 0.0
    %273 = vmatpush1.msra.mxu0 0.0
    %274 = vmatprep.subr.mxu0 0.0
    %275 = vmatpush1.msra.mxu0 0.0
    %276 = vmatprep.subr.mxu0 0.0
    %277 = vmatpush1.msra.mxu0 0.0
    %278 = vmatprep.subr.mxu0 0.0
    %279 = vmatpush1.msra.mxu0 0.0
    %280 = vmatprep.subr.mxu0 0.0
    %281 = vmatpush1.msra.mxu0 0.0
    %282 = vmatprep.subr.mxu0 0.0
    %283 = vmatpush1.msra.mxu0 0.0
    %284 = vmatprep.subr.mxu0 0.0
    %285 = vmatpush1.msra.mxu0 0.0
    %286 = vmatprep.subr.mxu0 0.0
    %287 = vmatpush1.msra.mxu0 0.0
    %288 = vmatprep.mubr.f32.mxu0 0.0
    %v289 = vand.u32 %v33, 4294901760
    %v290 = vsub.f32 %v33, %v289
    %291 = vmatmul.mubr.f32.gmra.mrb[0].mxu0 %v290
    %v292 = vpop.f32.mrb[0].mxu0
    %v293 = vadd.f32 %v209, %v292
    %v294 = vpop.f32.mrb[0].mxu0
    %295 = vmatprep.mubr.f32.mxu0 0.0
    %v296 = vand.u32 %v36, 4294901760
    %v297 = vsub.f32 %v36, %v296
    %298 = vmatmul.mubr.f32.gmra.mrb[0].mxu0 %v297
    %v299 = vpop.f32.mrb[0].mxu0
    %v300 = vadd.f32 %v215, %v299
    %v301 = vpop.f32.mrb[0].mxu0
    %302 = vdwg.mxu0
    %303 = vmatprep.subr.mxu0 0.0
    %v304 = vand.u32 %v28, 4294901760
    %305 = vmatpush1.msra.mxu0 %v304
    %306 = vmatprep.subr.mxu0 0.0
    %v307 = vand.u32 %v29, 4294901760
    %308 = vmatpush1.msra.mxu0 %v307
    %309 = vmatprep.subr.mxu0 0.0
    %v310 = vand.u32 %v30, 4294901760
    %311 = vmatpush1.msra.mxu0 %v310
    %312 = vmatprep.subr.mxu0 0.0
    %313 = vmatpush1.msra.mxu0 0.0
    %314 = vmatprep.subr.mxu0 0.0
    %315 = vmatpush1.msra.mxu0 0.0
    %316 = vmatprep.subr.mxu0 0.0
    %317 = vmatpush1.msra.mxu0 0.0
    %318 = vmatprep.subr.mxu0 0.0
    %319 = vmatpush1.msra.mxu0 0.0
    %320 = vmatprep.subr.mxu0 0.0
    %321 = vmatpush1.msra.mxu0 0.0
    %322 = vmatprep.subr.mxu0 0.0
    %323 = vmatpush1.msra.mxu0 0.0
    %324 = vmatprep.subr.mxu0 0.0
    %325 = vmatpush1.msra.mxu0 0.0
    %326 = vmatprep.subr.mxu0 0.0
    %327 = vmatpush1.msra.mxu0 0.0
    %328 = vmatprep.subr.mxu0 0.0
    %329 = vmatpush1.msra.mxu0 0.0
    %330 = vmatprep.subr.mxu0 0.0
    %331 = vmatpush1.msra.mxu0 0.0
    %332 = vmatprep.subr.mxu0 0.0
    %333 = vmatpush1.msra.mxu0 0.0
    %334 = vmatprep.subr.mxu0 0.0
    %335 = vmatpush1.msra.mxu0 0.0
    %336 = vmatprep.subr.mxu0 0.0
    %337 = vmatpush1.msra.mxu0 0.0
    %338 = vmatprep.subr.mxu0 0.0
    %339 = vmatpush1.msra.mxu0 0.0
    %340 = vmatprep.subr.mxu0 0.0
    %341 = vmatpush1.msra.mxu0 0.0
    %342 = vmatprep.subr.mxu0 0.0
    %343 = vmatpush1.msra.mxu0 0.0
    %344 = vmatprep.subr.mxu0 0.0
    %345 = vmatpush1.msra.mxu0 0.0
    %346 = vmatprep.subr.mxu0 0.0
    %347 = vmatpush1.msra.mxu0 0.0
    %348 = vmatprep.subr.mxu0 0.0
    %349 = vmatpush1.msra.mxu0 0.0
    %350 = vmatprep.subr.mxu0 0.0
    %351 = vmatpush1.msra.mxu0 0.0
    %352 = vmatprep.subr.mxu0 0.0
    %353 = vmatpush1.msra.mxu0 0.0
    %354 = vmatprep.subr.mxu0 0.0
    %355 = vmatpush1.msra.mxu0 0.0
    %356 = vmatprep.subr.mxu0 0.0
    %357 = vmatpush1.msra.mxu0 0.0
    %358 = vmatprep.subr.mxu0 0.0
    %359 = vmatpush1.msra.mxu0 0.0
    %360 = vmatprep.subr.mxu0 0.0
    %361 = vmatpush1.msra.mxu0 0.0
    %362 = vmatprep.subr.mxu0 0.0
    %363 = vmatpush1.msra.mxu0 0.0
    %364 = vmatprep.subr.mxu0 0.0
    %365 = vmatpush1.msra.mxu0 0.0
    %366 = vmatprep.subr.mxu0 0.0
    %367 = vmatpush1.msra.mxu0 0.0
    %368 = vmatprep.subr.mxu0 0.0
    %369 = vmatpush1.msra.mxu0 0.0
    %370 = vmatprep.mubr.f32.mxu0 0.0
    %v371 = vand.u32 %v33, 4294901760
    %v372 = vsub.f32 %v33, %v371
    %v373 = vand.u32 %v372, 4294901760
    %374 = vmatmul.mubr.f32.gmra.mrb[0].mxu0 %v373
    %v375 = vpop.f32.mrb[0].mxu0
    %v376 = vadd.f32 %v293, %v375
    %v377 = vpop.f32.mrb[0].mxu0
    %378 = vmatprep.mubr.f32.mxu0 0.0
    %v379 = vand.u32 %v36, 4294901760
    %v380 = vsub.f32 %v36, %v379
    %v381 = vand.u32 %v380, 4294901760
    %382 = vmatmul.mubr.f32.gmra.mrb[0].mxu0 %v381
    %v383 = vpop.f32.mrb[0].mxu0
    %v384 = vadd.f32 %v300, %v383
    %v385 = vpop.f32.mrb[0].mxu0
    %386 = vdwg.mxu0
    %387 = vmatprep.subr.mxu0 0.0
    %v388 = vand.u32 %v28, 4294901760
    %v389 = vsub.f32 %v28, %v388
    %v390 = vand.u32 %v389, 4294901760
    %391 = vmatpush1.msra.mxu0 %v390
    %392 = vmatprep.subr.mxu0 0.0
    %v393 = vand.u32 %v29, 4294901760
    %v394 = vsub.f32 %v29, %v393
    %v395 = vand.u32 %v394, 4294901760
    %396 = vmatpush1.msra.mxu0 %v395
    %397 = vmatprep.subr.mxu0 0.0
    %v398 = vand.u32 %v30, 4294901760
    %v399 = vsub.f32 %v30, %v398
    %v400 = vand.u32 %v399, 4294901760
    %401 = vmatpush1.msra.mxu0 %v400
    %402 = vmatprep.subr.mxu0 0.0
    %403 = vmatpush1.msra.mxu0 0.0
    %404 = vmatprep.subr.mxu0 0.0
    %405 = vmatpush1.msra.mxu0 0.0
    %406 = vmatprep.subr.mxu0 0.0
    %407 = vmatpush1.msra.mxu0 0.0
    %408 = vmatprep.subr.mxu0 0.0
    %409 = vmatpush1.msra.mxu0 0.0
    %410 = vmatprep.subr.mxu0 0.0
    %411 = vmatpush1.msra.mxu0 0.0
    %412 = vmatprep.subr.mxu0 0.0
    %413 = vmatpush1.msra.mxu0 0.0
    %414 = vmatprep.subr.mxu0 0.0
    %415 = vmatpush1.msra.mxu0 0.0
    %416 = vmatprep.subr.mxu0 0.0
    %417 = vmatpush1.msra.mxu0 0.0
    %418 = vmatprep.subr.mxu0 0.0
    %419 = vmatpush1.msra.mxu0 0.0
    %420 = vmatprep.subr.mxu0 0.0
    %421 = vmatpush1.msra.mxu0 0.0
    %422 = vmatprep.subr.mxu0 0.0
    %423 = vmatpush1.msra.mxu0 0.0
    %424 = vmatprep.subr.mxu0 0.0
    %425 = vmatpush1.msra.mxu0 0.0
    %426 = vmatprep.subr.mxu0 0.0
    %427 = vmatpush1.msra.mxu0 0.0
    %428 = vmatprep.subr.mxu0 0.0
    %429 = vmatpush1.msra.mxu0 0.0
    %430 = vmatprep.subr.mxu0 0.0
    %431 = vmatpush1.msra.mxu0 0.0
    %432 = vmatprep.subr.mxu0 0.0
    %433 = vmatpush1.msra.mxu0 0.0
    %434 = vmatprep.subr.mxu0 0.0
    %435 = vmatpush1.msra.mxu0 0.0
    %436 = vmatprep.subr.mxu0 0.0
    %437 = vmatpush1.msra.mxu0 0.0
    %438 = vmatprep.subr.mxu0 0.0
    %439 = vmatpush1.msra.mxu0 0.0
    %440 = vmatprep.subr.mxu0 0.0
    %441 = vmatpush1.msra.mxu0 0.0
    %442 = vmatprep.subr.mxu0 0.0
    %443 = vmatpush1.msra.mxu0 0.0
    %444 = vmatprep.subr.mxu0 0.0
    %445 = vmatpush1.msra.mxu0 0.0
    %446 = vmatprep.subr.mxu0 0.0
    %447 = vmatpush1.msra.mxu0 0.0
    %448 = vmatprep.subr.mxu0 0.0
    %449 = vmatpush1.msra.mxu0 0.0
    %450 = vmatprep.subr.mxu0 0.0
    %451 = vmatpush1.msra.mxu0 0.0
    %452 = vmatprep.subr.mxu0 0.0
    %453 = vmatpush1.msra.mxu0 0.0
    %454 = vmatprep.subr.mxu0 0.0
    %455 = vmatpush1.msra.mxu0 0.0
    %456 = vmatprep.subr.mxu0 0.0
    %457 = vmatpush1.msra.mxu0 0.0
    %458 = vmatprep.subr.mxu0 0.0
    %459 = vmatpush1.msra.mxu0 0.0
    %460 = vmatprep.mubr.f32.mxu0 0.0
    %v461 = vand.u32 %v33, 4294901760
    %462 = vmatmul.mubr.f32.gmra.mrb[0].mxu0 %v461
    %v463 = vpop.f32.mrb[0].mxu0
    %v464 = vadd.f32 %v376, %v463
    %v465 = vpop.f32.mrb[0].mxu0
    %466 = vmatprep.mubr.f32.mxu0 0.0
    %v467 = vand.u32 %v36, 4294901760
    %468 = vmatmul.mubr.f32.gmra.mrb[0].mxu0 %v467
    %v469 = vpop.f32.mrb[0].mxu0
    %v470 = vadd.f32 %v384, %v469
    %v471 = vpop.f32.mrb[0].mxu0
    %472 = vdwg.mxu0
    %473 = vmatprep.subr.mxu0 0.0
    %v474 = vand.u32 %v28, 4294901760
    %475 = vmatpush1.msra.mxu0 %v474
    %476 = vmatprep.subr.mxu0 0.0
    %v477 = vand.u32 %v29, 4294901760
    %478 = vmatpush1.msra.mxu0 %v477
    %479 = vmatprep.subr.mxu0 0.0
    %v480 = vand.u32 %v30, 4294901760
    %481 = vmatpush1.msra.mxu0 %v480
    %482 = vmatprep.subr.mxu0 0.0
    %483 = vmatpush1.msra.mxu0 0.0
    %484 = vmatprep.subr.mxu0 0.0
    %485 = vmatpush1.msra.mxu0 0.0
    %486 = vmatprep.subr.mxu0 0.0
    %487 = vmatpush1.msra.mxu0 0.0
    %488 = vmatprep.subr.mxu0 0.0
    %489 = vmatpush1.msra.mxu0 0.0
    %490 = vmatprep.subr.mxu0 0.0
    %491 = vmatpush1.msra.mxu0 0.0
    %492 = vmatprep.subr.mxu0 0.0
    %493 = vmatpush1.msra.mxu0 0.0
    %494 = vmatprep.subr.mxu0 0.0
    %495 = vmatpush1.msra.mxu0 0.0
    %496 = vmatprep.subr.mxu0 0.0
    %497 = vmatpush1.msra.mxu0 0.0
    %498 = vmatprep.subr.mxu0 0.0
    %499 = vmatpush1.msra.mxu0 0.0
    %500 = vmatprep.subr.mxu0 0.0
    %501 = vmatpush1.msra.mxu0 0.0
    %502 = vmatprep.subr.mxu0 0.0
    %503 = vmatpush1.msra.mxu0 0.0
    %504 = vmatprep.subr.mxu0 0.0
    %505 = vmatpush1.msra.mxu0 0.0
    %506 = vmatprep.subr.mxu0 0.0
    %507 = vmatpush1.msra.mxu0 0.0
    %508 = vmatprep.subr.mxu0 0.0
    %509 = vmatpush1.msra.mxu0 0.0
    %510 = vmatprep.subr.mxu0 0.0
    %511 = vmatpush1.msra.mxu0 0.0
    %512 = vmatprep.subr.mxu0 0.0
    %513 = vmatpush1.msra.mxu0 0.0
    %514 = vmatprep.subr.mxu0 0.0
    %515 = vmatpush1.msra.mxu0 0.0
    %516 = vmatprep.subr.mxu0 0.0
    %517 = vmatpush1.msra.mxu0 0.0
    %518 = vmatprep.subr.mxu0 0.0
    %519 = vmatpush1.msra.mxu0 0.0
    %520 = vmatprep.subr.mxu0 0.0
    %521 = vmatpush1.msra.mxu0 0.0
    %522 = vmatprep.subr.mxu0 0.0
    %523 = vmatpush1.msra.mxu0 0.0
    %524 = vmatprep.subr.mxu0 0.0
    %525 = vmatpush1.msra.mxu0 0.0
    %526 = vmatprep.subr.mxu0 0.0
    %527 = vmatpush1.msra.mxu0 0.0
    %528 = vmatprep.subr.mxu0 0.0
    %529 = vmatpush1.msra.mxu0 0.0
    %530 = vmatprep.subr.mxu0 0.0
    %531 = vmatpush1.msra.mxu0 0.0
    %532 = vmatprep.subr.mxu0 0.0
    %533 = vmatpush1.msra.mxu0 0.0
    %534 = vmatprep.subr.mxu0 0.0
    %535 = vmatpush1.msra.mxu0 0.0
    %536 = vmatprep.subr.mxu0 0.0
    %537 = vmatpush1.msra.mxu0 0.0
    %538 = vmatprep.subr.mxu0 0.0
    %539 = vmatpush1.msra.mxu0 0.0
    %540 = vmatprep.mubr.f32.mxu0 0.0
    %v541 = vand.u32 %v33, 4294901760
    %542 = vmatmul.mubr.f32.gmra.mrb[0].mxu0 %v541
    %v543 = vpop.f32.mrb[0].mxu0
    %v544 = vadd.f32 %v464, %v543
    %v545 = vpop.f32.mrb[0].mxu0
    %546 = vmatprep.mubr.f32.mxu0 0.0
    %v547 = vand.u32 %v36, 4294901760
    %548 = vmatmul.mubr.f32.gmra.mrb[0].mxu0 %v547
    %v549 = vpop.f32.mrb[0].mxu0
    %v550 = vadd.f32 %v470, %v549
    %v551 = vpop.f32.mrb[0].mxu0
    %552 = vdwg.mxu0
    %553 = vst [vmem:[#allocation2] sm:$0xff] %v544
    %554 = vst [vmem:[#allocation2 + $0x8] sm:$0xff] %v550
    // Predicated region
    $region10: #{word_embedding_forward.1} parent=1 // pred_check
      _
    $region11: #{word_embedding_forward.1} parent=1 // pred_check_branch
      %556 = sbr.rel (0) target = $region13
    $region12: #{word_embedding_forward.1} parent=1 // pred_region
      %s558 = ssub.s32 256, 256
      %559 = vsyncadd [#allocation3], %s558
      %s560 = sshll.u32 [#allocation2], 4
      %s561 = int_to_ptr.vmem [resolvable:$true] %s560
      %566 = dma.vmem_to_hbm [thread:$0]  %s561, 256, %s2, [#allocation3], 128, 128, 8
    $region13: #{word_embedding_forward.1} parent=1 // pred_fallthru
      _
    // Predicated region
    $region14: #{word_embedding_forward.1} parent=1 // pred_check
      _
    $region15: #{word_embedding_forward.1} parent=1 // pred_check_branch
      %568 = sbr.rel (0) target = $region17
    $region16: #{word_embedding_forward.1} parent=1 // pred_region
      %569 = dma.done [#allocation3], 256
    $region17: #{word_embedding_forward.1} parent=1 // pred_fallthru
      _
    %570 = vsyncpa [#allocation3], 1

</llo_original>
